<compile_context>
chip_gen: v7x
topology: tpu7x:2x2x1
jax: 0.10.0
libtpu: 0.0.40
codegen_flags: <defaults>
</compile_context>

<pallas_src>
import math
import functools

import jax
import jax.numpy as jnp
from jax.experimental import pallas as pl
from jax.experimental.pallas import tpu as pltpu


def _fused_attention_kernel(x_ref, w_ref, b_ref, g_ref, wo_ref, bo_ref, o_ref,
                            *, n_heads, head_dim):
    d_model = n_heads * head_dim
    f32, bf16 = jnp.float32, jnp.bfloat16

    # ---- fused [q | k | v] projection: one MXU pass, bf16 inputs, f32 accumulation ----
    # RoPE and the 1/sqrt(head_dim) scale are already folded into the weights/biases.
    qkv = jnp.dot(x_ref[...], w_ref[...], preferred_element_type=f32) + b_ref[...]
    q = qkv[:, :d_model]
    k = qkv[:, d_model:2 * d_model]
    v = qkv[:, 2 * d_model:]

    g = g_ref[...]                    # (D, D) bf16 block-diag of ones: per-head sum that
                                      # lands already broadcast across the head's lanes

    def rotate_heads(t, delta):
        # static lane rotation by delta*head_dim (head axis rotation); equivalent to
        # pltpu.roll(t, shift=-delta*head_dim, axis=-1) but written as a 2-slice concat.
        if delta == 0:
            return t
        s = delta * head_dim
        return jnp.concatenate([t[:, s:], t[:, :s]], axis=-1)

    # ---- attention over the head axis, scores kept in broadcast (lane-dense) form ----
    # sbc[delta][r, i*hd + c] = sum_d q[r, i, d] * k[r, (i+delta)%H, d]   (same value for
    # every lane c in head-i's group) == S_r[i, (i+delta)%H] pre-broadcast over head_dim.
    # max / exp / sum over delta therefore implement the softmax over j, lane-dense.
    sbc = [jnp.dot((q * rotate_heads(k, delta)).astype(bf16), g,
                   preferred_element_type=f32)
           for delta in range(n_heads)]

    m = sbc[0]
    for t in sbc[1:]:
        m = jnp.maximum(m, t)
    p = [jnp.exp(t - m) for t in sbc]

    denom = p[0]
    acc = p[0] * v
    for delta in range(1, n_heads):
        denom = denom + p[delta]
        acc = acc + p[delta] * rotate_heads(v, delta)

    # normalization hoisted out of the delta loop: one EUP reciprocal + one multiply.
    attn = acc * pl.reciprocal(denom, approx=True)

    # ---- output projection ------------------------------------------------------------
    o_ref[...] = (jnp.dot(attn.astype(bf16), wo_ref[...],
                          preferred_element_type=f32) + bo_ref[...])


def _rope_rotation_matrix(n_heads, head_dim):
    """Block-diagonal 2x2 rotation equal to the module's (head-indexed) interleaved RoPE.

    rope(y) == y @ R for row-vectors y, because the angle only depends on the column
    (head id x frequency), never on the row (batch/position)."""
    f32 = jnp.float32
    d_model = n_heads * head_dim
    inv_freq = 1.0 / (10000.0 ** (jnp.arange(0, head_dim, 2, dtype=f32) / head_dim))
    ang = jnp.outer(jnp.arange(n_heads, dtype=f32), inv_freq)   # angle indexed by head id
    cos = jnp.cos(ang).reshape(-1)                              # (d_model // 2,)
    sin = jnp.sin(ang).reshape(-1)
    ev = jnp.arange(0, d_model, 2)
    od = ev + 1
    rot = jnp.zeros((d_model, d_model), f32)
    rot = rot.at[ev, ev].set(cos).at[od, od].set(cos)
    rot = rot.at[ev, od].set(sin).at[od, ev].set(-sin)
    return rot   # per interleaved pair: (a, b) -> (a*cos - b*sin, a*sin + b*cos)


def _round_up(x, m):
    return ((x + m - 1) // m) * m


@functools.partial(jax.jit, static_argnames=("n_heads",))
def flash_self_attention(x, params, n_heads):
    b, n, d_model = x.shape
    assert d_model % n_heads == 0
    head_dim = d_model // n_heads
    assert n == n_heads, "module's RoPE broadcast requires seq_len == n_heads"

    f32, bf16 = jnp.float32, jnp.bfloat16
    rows = b * n

    # Fold RoPE + 1/sqrt(head_dim) into the projection weights:
    #   rope(x Wq^T + bq) / sqrt(hd) == x (Wq^T R / sqrt(hd)) + (bq R / sqrt(hd)).
    rot = _rope_rotation_matrix(n_heads, head_dim)
    scale = 1.0 / math.sqrt(head_dim)
    wq_rot = (params["wq"].T @ rot) * scale
    bq_rot = (params["bq"].reshape(1, -1) @ rot) * scale
    wk_rot = params["wk"].T @ rot
    bk_rot = params["bk"].reshape(1, -1) @ rot

    # Packed [q | k | v] weight (3*D columns, no K/V duplication).
    w_all = jnp.concatenate([wq_rot, wk_rot, params["wv"].T], axis=1).astype(bf16)
    b_all = jnp.concatenate([bq_rot, bk_rot, params["bv"].reshape(1, -1)],
                            axis=1).astype(f32)
    wo_t = params["wo"].T.astype(bf16)
    bo = params["bo"].reshape(1, d_model).astype(f32)

    # Block-diag "ones" selector: segmented per-head sum whose result is already
    # broadcast across the head's lanes (replaces the old (D,H)/(H,D) selectors).
    head_of_col = jnp.arange(d_model) // head_dim
    g = (head_of_col[:, None] == head_of_col[None, :]).astype(bf16)       # (D, D)

    x2 = x.reshape(rows, d_model).astype(bf16)

    # Row tiling: large blocks amortize the ~0.35us/step overhead, but keep >= 2
    # "parallel" grid steps whenever possible so both v7x TensorCores get work.
    # 16-row granularity matches bf16 sublane packing.  Pad rows instead of falling
    # back to one giant block.
    max_block = 512
    if rows >= 2 * max_block:
        row_block = max_block
    else:
        row_block = max(16, _round_up((rows + 1) // 2, 16))
    rows_p = _round_up(rows, row_block)
    if rows_p != rows:
        x2 = jnp.pad(x2, ((0, rows_p - rows), (0, 0)))
    grid = (rows_p // row_block,)

    out = pl.pallas_call(
        functools.partial(_fused_attention_kernel, n_heads=n_heads, head_dim=head_dim),
        grid=grid,
        in_specs=[
            pl.BlockSpec((row_block, d_model), lambda r: (r, 0)),       # x
            pl.BlockSpec((d_model, 3 * d_model), lambda r: (0, 0)),     # packed qkv weight
            pl.BlockSpec((1, 3 * d_model), lambda r: (0, 0)),           # packed qkv bias
            pl.BlockSpec((d_model, d_model), lambda r: (0, 0)),         # block-diag ones
            pl.BlockSpec((d_model, d_model), lambda r: (0, 0)),         # o_proj weight
            pl.BlockSpec((1, d_model), lambda r: (0, 0)),               # o_proj bias
        ],
        out_specs=pl.BlockSpec((row_block, d_model), lambda r: (r, 0)),
        out_shape=jax.ShapeDtypeStruct((rows_p, d_model), f32),
        compiler_params=pltpu.CompilerParams(
            dimension_semantics=("parallel",),
            vmem_limit_bytes=32 * 1024 * 1024),
    )(x2, w_all, b_all, g, wo_t, bo)

    return out[:rows].reshape(b, n, d_model)


def reference_forward(x, params, n_heads):
    """Pure-JAX replica of the PyTorch forward (eval mode, mask=None)."""
    b, n, d_model = x.shape
    h = n_heads
    d = d_model // h

    def lin(t, w, bias):
        return jnp.dot(t, w.T) + bias

    q = lin(x, params["wq"], params["bq"]).reshape(b, n, h, d)
    k = lin(x, params["wk"], params["bk"]).reshape(b, n, h, d)
    v = lin(x, params["wv"], params["bv"]).reshape(b, n, h, d)

    inv_freq = 1.0 / (10000.0 ** (jnp.arange(0, d, 2, dtype=jnp.float32) / d))
    ang = jnp.outer(jnp.arange(n, dtype=jnp.float32), inv_freq)   # freqs_cis[:n]
    cos, sin = jnp.cos(ang), jnp.sin(ang)                         # (n, d/2)

    def rope(t_):
        tr, ti = t_[..., 0::2], t_[..., 1::2]                     # (b, n, h, d/2)
        out_r = tr * cos - ti * sin                               # broadcast hits head axis
        out_i = tr * sin + ti * cos
        return jnp.stack([out_r, out_i], axis=-1).reshape(t_.shape)

    q, k = rope(q), rope(k)
    s = jnp.einsum("bnhd,bnkd->bnhk", q, k) / math.sqrt(d)
    p = jax.nn.softmax(s, axis=-1)
    o = jnp.einsum("bnhk,bnkd->bnhd", p, v).reshape(b, n, d_model)
    return jnp.dot(o, params["wo"].T) + params["bo"]


if __name__ == "__main__":
    d_model, n_heads = 64, 8
    batch, seq = 4, 8            # seq == n_heads (required by the module's RoPE broadcast)

    key = jax.random.PRNGKey(0)
    keys = jax.random.split(key, 9)

    def w(k):
        return jax.random.normal(k, (d_model, d_model), jnp.float32) * 0.05

    def bvec(k):
        return jax.random.normal(k, (d_model,), jnp.float32) * 0.05

    params = {
        "wq": w(keys[0]), "bq": bvec(keys[1]),
        "wk": w(keys[2]), "bk": bvec(keys[3]),
        "wv": w(keys[4]), "bv": bvec(keys[5]),
        "wo": w(keys[6]), "bo": bvec(keys[7]),
    }
    x = jax.random.normal(keys[8], (batch, seq, d_model), jnp.float32)

    out = jax.block_until_ready(flash_self_attention(x, params, n_heads=n_heads))
    ref = reference_forward(x, params, n_heads)

    assert out.shape == (batch, seq, d_model)
    err = float(jnp.max(jnp.abs(out - ref)))
    assert bool(jnp.allclose(out, ref, atol=2e-2, rtol=2e-2)), "max abs err = %f" % err
    print("KERNEL_OK")
</pallas_src>

<mosaic_0001>
module attributes {stable_mosaic.version = 11 : i64} {
  func.func @_fused_attention_kernel(%arg0: i32, %arg1: memref<16x64xbf16, #tpu.memory_space<vmem>>, %arg2: memref<64x192xbf16, #tpu.memory_space<vmem>>, %arg3: memref<1x192xf32, #tpu.memory_space<vmem>>, %arg4: memref<64x64xbf16, #tpu.memory_space<vmem>>, %arg5: memref<64x64xbf16, #tpu.memory_space<vmem>>, %arg6: memref<1x64xf32, #tpu.memory_space<vmem>>, %arg7: memref<16x64xf32, #tpu.memory_space<vmem>>) attributes {dimension_semantics = [#tpu.dimension_semantics<parallel>], iteration_bounds = array<i64: 2>, scalar_prefetch = 0 : i64, scratch_operands = 0 : i64, tpu.core_type = #tpu.core_type<tc>, window_params = [{transform_indices = @transform_0, window_bounds = array<i64: 16, 64>}, {pipeline_mode = #tpu.pipeline_mode<synchronous>, transform_indices = @transform_1, window_bounds = array<i64: 64, 192>}, {pipeline_mode = #tpu.pipeline_mode<synchronous>, transform_indices = @transform_2, window_bounds = array<i64: 1, 192>}, {pipeline_mode = #tpu.pipeline_mode<synchronous>, transform_indices = @transform_3, window_bounds = array<i64: 64, 64>}, {pipeline_mode = #tpu.pipeline_mode<synchronous>, transform_indices = @transform_4, window_bounds = array<i64: 64, 64>}, {pipeline_mode = #tpu.pipeline_mode<synchronous>, transform_indices = @transform_5, window_bounds = array<i64: 1, 64>}, {transform_indices = @transform_6, window_bounds = array<i64: 16, 64>}]} {
    %c0 = arith.constant 0 : index
    %c0_0 = arith.constant 0 : index
    %0 = vector.load %arg1[%c0, %c0_0] : memref<16x64xbf16, #tpu.memory_space<vmem>>, vector<16x64xbf16>
    %c0_1 = arith.constant 0 : index
    %c0_2 = arith.constant 0 : index
    %1 = vector.load %arg2[%c0_1, %c0_2] : memref<64x192xbf16, #tpu.memory_space<vmem>>, vector<64x192xbf16>
    %cst = arith.constant dense<0.000000e+00> : vector<16x192xf32>
    %2 = tpu.matmul %0, %1, %cst {dimension_numbers = #tpu.dot_dimension_numbers<[1], [0], [0], [1], [0, 0, 1, 1], [], []>} : vector<16x64xbf16>, vector<64x192xbf16>, vector<16x192xf32> -> vector<16x192xf32>
    %c0_3 = arith.constant 0 : index
    %c0_4 = arith.constant 0 : index
    %3 = vector.load %arg3[%c0_3, %c0_4] : memref<1x192xf32, #tpu.memory_space<vmem>>, vector<1x192xf32>
    %4 = vector.broadcast %3 : vector<1x192xf32> to vector<16x192xf32>
    %5 = arith.addf %2, %4 : vector<16x192xf32>
    %6 = vector.extract_strided_slice %5 {offsets = [0, 0], sizes = [16, 64], strides = [1, 1]} : vector<16x192xf32> to vector<16x64xf32>
    %7 = vector.extract_strided_slice %5 {offsets = [0, 64], sizes = [16, 64], strides = [1, 1]} : vector<16x192xf32> to vector<16x64xf32>
    %8 = vector.extract_strided_slice %5 {offsets = [0, 128], sizes = [16, 64], strides = [1, 1]} : vector<16x192xf32> to vector<16x64xf32>
    %c0_5 = arith.constant 0 : index
    %c0_6 = arith.constant 0 : index
    %9 = vector.load %arg4[%c0_5, %c0_6] : memref<64x64xbf16, #tpu.memory_space<vmem>>, vector<64x64xbf16>
    %10 = arith.mulf %6, %7 : vector<16x64xf32>
    %11 = arith.truncf %10 : vector<16x64xf32> to vector<16x64xbf16>
    %cst_7 = arith.constant dense<0.000000e+00> : vector<16x64xf32>
    %12 = tpu.matmul %11, %9, %cst_7 {dimension_numbers = #tpu.dot_dimension_numbers<[1], [0], [0], [1], [0, 0, 1, 1], [], []>} : vector<16x64xbf16>, vector<64x64xbf16>, vector<16x64xf32> -> vector<16x64xf32>
    %13 = vector.extract_strided_slice %7 {offsets = [0, 8], sizes = [16, 56], strides = [1, 1]} : vector<16x64xf32> to vector<16x56xf32>
    %14 = vector.extract_strided_slice %7 {offsets = [0, 0], sizes = [16, 8], strides = [1, 1]} : vector<16x64xf32> to vector<16x8xf32>
    %15 = tpu.concatenate %13, %14 in 1 : vector<16x56xf32>, vector<16x8xf32> -> vector<16x64xf32>
    %16 = arith.mulf %6, %15 : vector<16x64xf32>
    %17 = arith.truncf %16 : vector<16x64xf32> to vector<16x64xbf16>
    %cst_8 = arith.constant dense<0.000000e+00> : vector<16x64xf32>
    %18 = tpu.matmul %17, %9, %cst_8 {dimension_numbers = #tpu.dot_dimension_numbers<[1], [0], [0], [1], [0, 0, 1, 1], [], []>} : vector<16x64xbf16>, vector<64x64xbf16>, vector<16x64xf32> -> vector<16x64xf32>
    %19 = vector.extract_strided_slice %7 {offsets = [0, 16], sizes = [16, 48], strides = [1, 1]} : vector<16x64xf32> to vector<16x48xf32>
    %20 = vector.extract_strided_slice %7 {offsets = [0, 0], sizes = [16, 16], strides = [1, 1]} : vector<16x64xf32> to vector<16x16xf32>
    %21 = tpu.concatenate %19, %20 in 1 : vector<16x48xf32>, vector<16x16xf32> -> vector<16x64xf32>
    %22 = arith.mulf %6, %21 : vector<16x64xf32>
    %23 = arith.truncf %22 : vector<16x64xf32> to vector<16x64xbf16>
    %cst_9 = arith.constant dense<0.000000e+00> : vector<16x64xf32>
    %24 = tpu.matmul %23, %9, %cst_9 {dimension_numbers = #tpu.dot_dimension_numbers<[1], [0], [0], [1], [0, 0, 1, 1], [], []>} : vector<16x64xbf16>, vector<64x64xbf16>, vector<16x64xf32> -> vector<16x64xf32>
    %25 = vector.extract_strided_slice %7 {offsets = [0, 24], sizes = [16, 40], strides = [1, 1]} : vector<16x64xf32> to vector<16x40xf32>
    %26 = vector.extract_strided_slice %7 {offsets = [0, 0], sizes = [16, 24], strides = [1, 1]} : vector<16x64xf32> to vector<16x24xf32>
    %27 = tpu.concatenate %25, %26 in 1 : vector<16x40xf32>, vector<16x24xf32> -> vector<16x64xf32>
    %28 = arith.mulf %6, %27 : vector<16x64xf32>
    %29 = arith.truncf %28 : vector<16x64xf32> to vector<16x64xbf16>
    %cst_10 = arith.constant dense<0.000000e+00> : vector<16x64xf32>
    %30 = tpu.matmul %29, %9, %cst_10 {dimension_numbers = #tpu.dot_dimension_numbers<[1], [0], [0], [1], [0, 0, 1, 1], [], []>} : vector<16x64xbf16>, vector<64x64xbf16>, vector<16x64xf32> -> vector<16x64xf32>
    %31 = vector.extract_strided_slice %7 {offsets = [0, 32], sizes = [16, 32], strides = [1, 1]} : vector<16x64xf32> to vector<16x32xf32>
    %32 = vector.extract_strided_slice %7 {offsets = [0, 0], sizes = [16, 32], strides = [1, 1]} : vector<16x64xf32> to vector<16x32xf32>
    %33 = tpu.concatenate %31, %32 in 1 : vector<16x32xf32>, vector<16x32xf32> -> vector<16x64xf32>
    %34 = arith.mulf %6, %33 : vector<16x64xf32>
    %35 = arith.truncf %34 : vector<16x64xf32> to vector<16x64xbf16>
    %cst_11 = arith.constant dense<0.000000e+00> : vector<16x64xf32>
    %36 = tpu.matmul %35, %9, %cst_11 {dimension_numbers = #tpu.dot_dimension_numbers<[1], [0], [0], [1], [0, 0, 1, 1], [], []>} : vector<16x64xbf16>, vector<64x64xbf16>, vector<16x64xf32> -> vector<16x64xf32>
    %37 = vector.extract_strided_slice %7 {offsets = [0, 40], sizes = [16, 24], strides = [1, 1]} : vector<16x64xf32> to vector<16x24xf32>
    %38 = vector.extract_strided_slice %7 {offsets = [0, 0], sizes = [16, 40], strides = [1, 1]} : vector<16x64xf32> to vector<16x40xf32>
    %39 = tpu.concatenate %37, %38 in 1 : vector<16x24xf32>, vector<16x40xf32> -> vector<16x64xf32>
    %40 = arith.mulf %6, %39 : vector<16x64xf32>
    %41 = arith.truncf %40 : vector<16x64xf32> to vector<16x64xbf16>
    %cst_12 = arith.constant dense<0.000000e+00> : vector<16x64xf32>
    %42 = tpu.matmul %41, %9, %cst_12 {dimension_numbers = #tpu.dot_dimension_numbers<[1], [0], [0], [1], [0, 0, 1, 1], [], []>} : vector<16x64xbf16>, vector<64x64xbf16>, vector<16x64xf32> -> vector<16x64xf32>
    %43 = vector.extract_strided_slice %7 {offsets = [0, 48], sizes = [16, 16], strides = [1, 1]} : vector<16x64xf32> to vector<16x16xf32>
    %44 = vector.extract_strided_slice %7 {offsets = [0, 0], sizes = [16, 48], strides = [1, 1]} : vector<16x64xf32> to vector<16x48xf32>
    %45 = tpu.concatenate %43, %44 in 1 : vector<16x16xf32>, vector<16x48xf32> -> vector<16x64xf32>
    %46 = arith.mulf %6, %45 : vector<16x64xf32>
    %47 = arith.truncf %46 : vector<16x64xf32> to vector<16x64xbf16>
    %cst_13 = arith.constant dense<0.000000e+00> : vector<16x64xf32>
    %48 = tpu.matmul %47, %9, %cst_13 {dimension_numbers = #tpu.dot_dimension_numbers<[1], [0], [0], [1], [0, 0, 1, 1], [], []>} : vector<16x64xbf16>, vector<64x64xbf16>, vector<16x64xf32> -> vector<16x64xf32>
    %49 = vector.extract_strided_slice %7 {offsets = [0, 56], sizes = [16, 8], strides = [1, 1]} : vector<16x64xf32> to vector<16x8xf32>
    %50 = vector.extract_strided_slice %7 {offsets = [0, 0], sizes = [16, 56], strides = [1, 1]} : vector<16x64xf32> to vector<16x56xf32>
    %51 = tpu.concatenate %49, %50 in 1 : vector<16x8xf32>, vector<16x56xf32> -> vector<16x64xf32>
    %52 = arith.mulf %6, %51 : vector<16x64xf32>
    %53 = arith.truncf %52 : vector<16x64xf32> to vector<16x64xbf16>
    %cst_14 = arith.constant dense<0.000000e+00> : vector<16x64xf32>
    %54 = tpu.matmul %53, %9, %cst_14 {dimension_numbers = #tpu.dot_dimension_numbers<[1], [0], [0], [1], [0, 0, 1, 1], [], []>} : vector<16x64xbf16>, vector<64x64xbf16>, vector<16x64xf32> -> vector<16x64xf32>
    %55 = arith.maximumf %12, %18 : vector<16x64xf32>
    %56 = arith.maximumf %55, %24 : vector<16x64xf32>
    %57 = arith.maximumf %56, %30 : vector<16x64xf32>
    %58 = arith.maximumf %57, %36 : vector<16x64xf32>
    %59 = arith.maximumf %58, %42 : vector<16x64xf32>
    %60 = arith.maximumf %59, %48 : vector<16x64xf32>
    %61 = arith.maximumf %60, %54 : vector<16x64xf32>
    %62 = arith.subf %12, %61 : vector<16x64xf32>
    %63 = math.exp %62 : vector<16x64xf32>
    %64 = arith.subf %18, %61 : vector<16x64xf32>
    %65 = math.exp %64 : vector<16x64xf32>
    %66 = arith.subf %24, %61 : vector<16x64xf32>
    %67 = math.exp %66 : vector<16x64xf32>
    %68 = arith.subf %30, %61 : vector<16x64xf32>
    %69 = math.exp %68 : vector<16x64xf32>
    %70 = arith.subf %36, %61 : vector<16x64xf32>
    %71 = math.exp %70 : vector<16x64xf32>
    %72 = arith.subf %42, %61 : vector<16x64xf32>
    %73 = math.exp %72 : vector<16x64xf32>
    %74 = arith.subf %48, %61 : vector<16x64xf32>
    %75 = math.exp %74 : vector<16x64xf32>
    %76 = arith.subf %54, %61 : vector<16x64xf32>
    %77 = math.exp %76 : vector<16x64xf32>
    %78 = arith.mulf %63, %8 : vector<16x64xf32>
    %79 = arith.addf %63, %65 : vector<16x64xf32>
    %80 = vector.extract_strided_slice %8 {offsets = [0, 8], sizes = [16, 56], strides = [1, 1]} : vector<16x64xf32> to vector<16x56xf32>
    %81 = vector.extract_strided_slice %8 {offsets = [0, 0], sizes = [16, 8], strides = [1, 1]} : vector<16x64xf32> to vector<16x8xf32>
    %82 = tpu.concatenate %80, %81 in 1 : vector<16x56xf32>, vector<16x8xf32> -> vector<16x64xf32>
    %83 = arith.mulf %65, %82 : vector<16x64xf32>
    %84 = arith.addf %78, %83 : vector<16x64xf32>
    %85 = arith.addf %79, %67 : vector<16x64xf32>
    %86 = vector.extract_strided_slice %8 {offsets = [0, 16], sizes = [16, 48], strides = [1, 1]} : vector<16x64xf32> to vector<16x48xf32>
    %87 = vector.extract_strided_slice %8 {offsets = [0, 0], sizes = [16, 16], strides = [1, 1]} : vector<16x64xf32> to vector<16x16xf32>
    %88 = tpu.concatenate %86, %87 in 1 : vector<16x48xf32>, vector<16x16xf32> -> vector<16x64xf32>
    %89 = arith.mulf %67, %88 : vector<16x64xf32>
    %90 = arith.addf %84, %89 : vector<16x64xf32>
    %91 = arith.addf %85, %69 : vector<16x64xf32>
    %92 = vector.extract_strided_slice %8 {offsets = [0, 24], sizes = [16, 40], strides = [1, 1]} : vector<16x64xf32> to vector<16x40xf32>
    %93 = vector.extract_strided_slice %8 {offsets = [0, 0], sizes = [16, 24], strides = [1, 1]} : vector<16x64xf32> to vector<16x24xf32>
    %94 = tpu.concatenate %92, %93 in 1 : vector<16x40xf32>, vector<16x24xf32> -> vector<16x64xf32>
    %95 = arith.mulf %69, %94 : vector<16x64xf32>
    %96 = arith.addf %90, %95 : vector<16x64xf32>
    %97 = arith.addf %91, %71 : vector<16x64xf32>
    %98 = vector.extract_strided_slice %8 {offsets = [0, 32], sizes = [16, 32], strides = [1, 1]} : vector<16x64xf32> to vector<16x32xf32>
    %99 = vector.extract_strided_slice %8 {offsets = [0, 0], sizes = [16, 32], strides = [1, 1]} : vector<16x64xf32> to vector<16x32xf32>
    %100 = tpu.concatenate %98, %99 in 1 : vector<16x32xf32>, vector<16x32xf32> -> vector<16x64xf32>
    %101 = arith.mulf %71, %100 : vector<16x64xf32>
    %102 = arith.addf %96, %101 : vector<16x64xf32>
    %103 = arith.addf %97, %73 : vector<16x64xf32>
    %104 = vector.extract_strided_slice %8 {offsets = [0, 40], sizes = [16, 24], strides = [1, 1]} : vector<16x64xf32> to vector<16x24xf32>
    %105 = vector.extract_strided_slice %8 {offsets = [0, 0], sizes = [16, 40], strides = [1, 1]} : vector<16x64xf32> to vector<16x40xf32>
    %106 = tpu.concatenate %104, %105 in 1 : vector<16x24xf32>, vector<16x40xf32> -> vector<16x64xf32>
    %107 = arith.mulf %73, %106 : vector<16x64xf32>
    %108 = arith.addf %102, %107 : vector<16x64xf32>
    %109 = arith.addf %103, %75 : vector<16x64xf32>
    %110 = vector.extract_strided_slice %8 {offsets = [0, 48], sizes = [16, 16], strides = [1, 1]} : vector<16x64xf32> to vector<16x16xf32>
    %111 = vector.extract_strided_slice %8 {offsets = [0, 0], sizes = [16, 48], strides = [1, 1]} : vector<16x64xf32> to vector<16x48xf32>
    %112 = tpu.concatenate %110, %111 in 1 : vector<16x16xf32>, vector<16x48xf32> -> vector<16x64xf32>
    %113 = arith.mulf %75, %112 : vector<16x64xf32>
    %114 = arith.addf %108, %113 : vector<16x64xf32>
    %115 = arith.addf %109, %77 : vector<16x64xf32>
    %116 = vector.extract_strided_slice %8 {offsets = [0, 56], sizes = [16, 8], strides = [1, 1]} : vector<16x64xf32> to vector<16x8xf32>
    %117 = vector.extract_strided_slice %8 {offsets = [0, 0], sizes = [16, 56], strides = [1, 1]} : vector<16x64xf32> to vector<16x56xf32>
    %118 = tpu.concatenate %116, %117 in 1 : vector<16x8xf32>, vector<16x56xf32> -> vector<16x64xf32>
    %119 = arith.mulf %77, %118 : vector<16x64xf32>
    %120 = arith.addf %114, %119 : vector<16x64xf32>
    %121 = tpu.reciprocal %115 {approx = true} : vector<16x64xf32> -> vector<16x64xf32>
    %122 = arith.mulf %120, %121 : vector<16x64xf32>
    %123 = arith.truncf %122 : vector<16x64xf32> to vector<16x64xbf16>
    %c0_15 = arith.constant 0 : index
    %c0_16 = arith.constant 0 : index
    %124 = vector.load %arg5[%c0_15, %c0_16] : memref<64x64xbf16, #tpu.memory_space<vmem>>, vector<64x64xbf16>
    %cst_17 = arith.constant dense<0.000000e+00> : vector<16x64xf32>
    %125 = tpu.matmul %123, %124, %cst_17 {dimension_numbers = #tpu.dot_dimension_numbers<[1], [0], [0], [1], [0, 0, 1, 1], [], []>} : vector<16x64xbf16>, vector<64x64xbf16>, vector<16x64xf32> -> vector<16x64xf32>
    %c0_18 = arith.constant 0 : index
    %c0_19 = arith.constant 0 : index
    %126 = vector.load %arg6[%c0_18, %c0_19] : memref<1x64xf32, #tpu.memory_space<vmem>>, vector<1x64xf32>
    %127 = vector.broadcast %126 : vector<1x64xf32> to vector<16x64xf32>
    %128 = arith.addf %125, %127 : vector<16x64xf32>
    %c0_20 = arith.constant 0 : index
    %c0_21 = arith.constant 0 : index
    %129 = vector.load %arg7[%c0_20, %c0_21] : memref<16x64xf32, #tpu.memory_space<vmem>>, vector<16x64xf32>
    tpu.vector_store %arg7[%c0_20, %c0_21], %128 {strides = array<i32>} : memref<16x64xf32, #tpu.memory_space<vmem>>, vector<16x64xf32>,
    return
  }
  func.func @transform_0(%arg0: i32) -> (i32, i32) {
    %c0_i32 = arith.constant 0 : i32
    %c0_i32_0 = arith.constant 0 : i32
    return %arg0, %c0_i32 : i32, i32
  }
  func.func @transform_1(%arg0: i32) -> (i32, i32) {
    %c0_i32 = arith.constant 0 : i32
    %c0_i32_0 = arith.constant 0 : i32
    %c0_i32_1 = arith.constant 0 : i32
    return %c0_i32, %c0_i32_0 : i32, i32
  }
  func.func @transform_2(%arg0: i32) -> (i32, i32) {
    %c0_i32 = arith.constant 0 : i32
    %c0_i32_0 = arith.constant 0 : i32
    %c0_i32_1 = arith.constant 0 : i32
    return %c0_i32, %c0_i32_0 : i32, i32
  }
  func.func @transform_3(%arg0: i32) -> (i32, i32) {
    %c0_i32 = arith.constant 0 : i32
    %c0_i32_0 = arith.constant 0 : i32
    %c0_i32_1 = arith.constant 0 : i32
    return %c0_i32, %c0_i32_0 : i32, i32
  }
  func.func @transform_4(%arg0: i32) -> (i32, i32) {
    %c0_i32 = arith.constant 0 : i32
    %c0_i32_0 = arith.constant 0 : i32
    %c0_i32_1 = arith.constant 0 : i32
    return %c0_i32, %c0_i32_0 : i32, i32
  }
  func.func @transform_5(%arg0: i32) -> (i32, i32) {
    %c0_i32 = arith.constant 0 : i32
    %c0_i32_0 = arith.constant 0 : i32
    %c0_i32_1 = arith.constant 0 : i32
    return %c0_i32, %c0_i32_0 : i32, i32
  }
  func.func @transform_6(%arg0: i32) -> (i32, i32) {
    %c0_i32 = arith.constant 0 : i32
    %c0_i32_0 = arith.constant 0 : i32
    return %arg0, %c0_i32 : i32, i32
  }
}

</mosaic_0001>

<llo_original>
// kernel: neg.1
$region0: #{neg.1}
  #allocation0 [shape = 's32[1]{0}', space=sflag, size = 0x4, scoped, tag = 'scoped memory for neg.1']
  %s0 = inlined_call_operand.vmem [shape: f32[32], index: 0, kind: input, shape index: {}]
  %s1 = inlined_call_operand.vmem [shape: f32[32], index: 1, kind: output, shape index: {}]
  %v2 = vld [vmem:[%s0] sm:$0x1]
  %3 = xla_tuple %v2
  %4 = xla_tuple %3
  %v5 = vxor.u32 %v2, 2147483648
  %6 = xla_tuple %v5
  %7 = vst [vmem:[%s1] sm:$0x1] %v5

// kernel: flash_self_attention.1
$region0: #{flash_self_attention.1}
  #allocation0 [shape = 'u32[]', space=smem, size = 0x4, offset = 0x4, fixed_abs, tag = 'smem constant byte address 0x4 - core index']
  #allocation1 [shape = 'u32[144,128]{1,0:T(1,128)}', space=vmem, size = 0x12000, scoped, tag = 'internal scratch']
  %s0 = inlined_call_operand.vmem [shape: bf16[32,64], index: 0, kind: input, shape index: {}]
  %s1 = inlined_call_operand.vmem [shape: bf16[64,192], index: 1, kind: input, shape index: {}]
  %s2 = inlined_call_operand.vmem [shape: f32[1,192], index: 2, kind: input, shape index: {}]
  %s3 = inlined_call_operand.vmem [shape: bf16[64,64], index: 3, kind: input, shape index: {}]
  %s4 = inlined_call_operand.vmem [shape: bf16[64,64], index: 4, kind: input, shape index: {}]
  %s5 = inlined_call_operand.vmem [shape: f32[1,64], index: 5, kind: input, shape index: {}]
  %s6 = inlined_call_operand.hbm [shape: f32[32,64], index: 6, kind: output, shape index: {}]
  %s7 = sld [smem:[#allocation0]]
  $region57: #{flash_self_attention.1} parent=0
    _
  %s9 = ssub.s32 1, %s7
  %s10 = scalar_select 0, %s9, %s7
  $region1: #{flash_self_attention.1} parent=0
    #allocation2 [shape = 'u8[16384]{0}', space=vmem, size = 0x4000, scoped, tag = 'output window, operand 0']
    #allocation3 [shape = 's32[2]{0}', space=sflag, size = 0x8, scoped, tag = 'scoped memory for flash_self_attention.1']
    %11 = vsyncpa [#allocation3], 0
    %s12 = scalar_lea.sflag [#allocation3], 1
    %13 = vsyncpa %s12, 0
    loop: start=0, step=1, limit=4
    $region2: #{flash_self_attention.1} parent=1 // loop_pre_header
      _
    $region3: #{flash_self_attention.1} parent=1 // loop_header
      %s15 = sphi 0, %s19
      %p16 = scmp.ge.s32.totalorder %s15, 4
      %s25 = sphi 0, %s27
      %s28 = sphi 0, %s25
      %s29 = sphi 0, %s28
      %s45 = sphi 0, %s29
      %s49 = sphi 0, %s49
      %s51 = sphi 0, %s49
      %s52 = sphi 0, %s51
      %s66 = sphi 0, %s52
      %s70 = sphi 0, %s70
      %s72 = sphi 0, %s70
      %s73 = sphi 0, %s72
      %s87 = sphi 0, %s73
      %s91 = sphi 0, %s91
      %s93 = sphi 0, %s91
      %s94 = sphi 0, %s93
      %s108 = sphi 0, %s94
      %s112 = sphi 0, %s112
      %s114 = sphi 0, %s112
      %s115 = sphi 0, %s114
      %s129 = sphi 0, %s115
      %s133 = sphi 0, %s133
      %s135 = sphi 0, %s133
      %s136 = sphi 0, %s135
      %s150 = sphi 0, %s136
      %s156 = sphi 0, %s158
      %s159 = sphi 0, %s156
      %s160 = sphi 0, %s159
      %s176 = sphi 0, %s160
    $region4: #{flash_self_attention.1} parent=1 // loop_header_branch
      %18 = sbr.rel (%p16) target = $region8
    $region5: #{flash_self_attention.1} parent=1 // loop_body
      %s20 = ssub.s32 %s15, 1
      %s21 = ssub.s32 %s15, 2
      %s22 = sadd.s32 %s15, 1
      %s23 = ssub.s32 %s15, %s22
      %p24 = scmp.eq.s32.totalorder %s23, 0
      %s26 = sadd.s32 %s25, 1
      %s27 = scalar_select %p24, %s25, %s26
      %p30 = pneg %p24
      %p31 = scmp.eq.s32.totalorder %s15, 1
      %p32 = por %p30, %p31
      %p33 = scmp.ne.s32.totalorder %s25, %s28
      %p34 = scmp.eq.s32.totalorder %s15, 0
      %p35 = por %p33, %p34
      %p36 = scmp.ne.s32.totalorder %s25, %s28
      %p37 = scmp.eq.s32.totalorder %s20, 1
      %p38 = por %p36, %p37
      %p39 = scmp.ne.s32.totalorder %s28, %s29
      %p40 = scmp.eq.s32.totalorder %s20, 0
      %p41 = por %p39, %p40
      %p42 = scmp.ne.s32.totalorder %s28, %s29
      %p43 = scmp.eq.s32.totalorder %s21, 1
      %p44 = por %p42, %p43
      %p46 = scmp.ne.s32.totalorder %s29, %s45
      %p47 = scmp.eq.s32.totalorder %s21, 0
      %p48 = por %p46, %p47
      %s50 = sadd.s32 %s49, 1
      %p53 = scmp.eq.s32.totalorder %s15, 1
      %p54 = scmp.ne.s32.totalorder %s49, %s51
      %p55 = scmp.eq.s32.totalorder %s15, 0
      %p56 = por %p54, %p55
      %p57 = scmp.ne.s32.totalorder %s49, %s51
      %p58 = scmp.eq.s32.totalorder %s20, 1
      %p59 = por %p57, %p58
      %p60 = scmp.ne.s32.totalorder %s51, %s52
      %p61 = scmp.eq.s32.totalorder %s20, 0
      %p62 = por %p60, %p61
      %p63 = scmp.ne.s32.totalorder %s51, %s52
      %p64 = scmp.eq.s32.totalorder %s21, 1
      %p65 = por %p63, %p64
      %p67 = scmp.ne.s32.totalorder %s52, %s66
      %p68 = scmp.eq.s32.totalorder %s21, 0
      %p69 = por %p67, %p68
      %s71 = sadd.s32 %s70, 1
      %p74 = scmp.eq.s32.totalorder %s15, 1
      %p75 = scmp.ne.s32.totalorder %s70, %s72
      %p76 = scmp.eq.s32.totalorder %s15, 0
      %p77 = por %p75, %p76
      %p78 = scmp.ne.s32.totalorder %s70, %s72
      %p79 = scmp.eq.s32.totalorder %s20, 1
      %p80 = por %p78, %p79
      %p81 = scmp.ne.s32.totalorder %s72, %s73
      %p82 = scmp.eq.s32.totalorder %s20, 0
      %p83 = por %p81, %p82
      %p84 = scmp.ne.s32.totalorder %s72, %s73
      %p85 = scmp.eq.s32.totalorder %s21, 1
      %p86 = por %p84, %p85
      %p88 = scmp.ne.s32.totalorder %s73, %s87
      %p89 = scmp.eq.s32.totalorder %s21, 0
      %p90 = por %p88, %p89
      %s92 = sadd.s32 %s91, 1
      %p95 = scmp.eq.s32.totalorder %s15, 1
      %p96 = scmp.ne.s32.totalorder %s91, %s93
      %p97 = scmp.eq.s32.totalorder %s15, 0
      %p98 = por %p96, %p97
      %p99 = scmp.ne.s32.totalorder %s91, %s93
      %p100 = scmp.eq.s32.totalorder %s20, 1
      %p101 = por %p99, %p100
      %p102 = scmp.ne.s32.totalorder %s93, %s94
      %p103 = scmp.eq.s32.totalorder %s20, 0
      %p104 = por %p102, %p103
      %p105 = scmp.ne.s32.totalorder %s93, %s94
      %p106 = scmp.eq.s32.totalorder %s21, 1
      %p107 = por %p105, %p106
      %p109 = scmp.ne.s32.totalorder %s94, %s108
      %p110 = scmp.eq.s32.totalorder %s21, 0
      %p111 = por %p109, %p110
      %s113 = sadd.s32 %s112, 1
      %p116 = scmp.eq.s32.totalorder %s15, 1
      %p117 = scmp.ne.s32.totalorder %s112, %s114
      %p118 = scmp.eq.s32.totalorder %s15, 0
      %p119 = por %p117, %p118
      %p120 = scmp.ne.s32.totalorder %s112, %s114
      %p121 = scmp.eq.s32.totalorder %s20, 1
      %p122 = por %p120, %p121
      %p123 = scmp.ne.s32.totalorder %s114, %s115
      %p124 = scmp.eq.s32.totalorder %s20, 0
      %p125 = por %p123, %p124
      %p126 = scmp.ne.s32.totalorder %s114, %s115
      %p127 = scmp.eq.s32.totalorder %s21, 1
      %p128 = por %p126, %p127
      %p130 = scmp.ne.s32.totalorder %s115, %s129
      %p131 = scmp.eq.s32.totalorder %s21, 0
      %p132 = por %p130, %p131
      %s134 = sadd.s32 %s133, 1
      %p137 = scmp.eq.s32.totalorder %s15, 1
      %p138 = scmp.ne.s32.totalorder %s133, %s135
      %p139 = scmp.eq.s32.totalorder %s15, 0
      %p140 = por %p138, %p139
      %p141 = scmp.ne.s32.totalorder %s133, %s135
      %p142 = scmp.eq.s32.totalorder %s20, 1
      %p143 = por %p141, %p142
      %p144 = scmp.ne.s32.totalorder %s135, %s136
      %p145 = scmp.eq.s32.totalorder %s20, 0
      %p146 = por %p144, %p145
      %p147 = scmp.ne.s32.totalorder %s135, %s136
      %p148 = scmp.eq.s32.totalorder %s21, 1
      %p149 = por %p147, %p148
      %p151 = scmp.ne.s32.totalorder %s136, %s150
      %p152 = scmp.eq.s32.totalorder %s21, 0
      %p153 = por %p151, %p152
      %s154 = ssub.s32 %s15, %s22
      %p155 = scmp.eq.s32.totalorder %s154, 0
      %s157 = sadd.s32 %s156, 1
      %s158 = scalar_select %p155, %s156, %s157
      %p161 = pneg %p155
      %p162 = scmp.eq.s32.totalorder %s15, 1
      %p163 = por %p161, %p162
      %p164 = scmp.ne.s32.totalorder %s156, %s159
      %p165 = scmp.eq.s32.totalorder %s15, 0
      %p166 = por %p164, %p165
      %p167 = scmp.ne.s32.totalorder %s156, %s159
      %p168 = scmp.eq.s32.totalorder %s20, 1
      %p169 = por %p167, %p168
      %p170 = scmp.ne.s32.totalorder %s159, %s160
      %p171 = scmp.eq.s32.totalorder %s20, 0
      %p172 = por %p170, %p171
      %p173 = scmp.ne.s32.totalorder %s159, %s160
      %p174 = scmp.eq.s32.totalorder %s21, 1
      %p175 = por %p173, %p174
      %p177 = scmp.ne.s32.totalorder %s160, %s176
      %p178 = scmp.eq.s32.totalorder %s21, 0
      %p179 = por %p177, %p178
      %p180 = scmp.le.s32.totalorder 1, %s15
      %p181 = scmp.lt.s32.totalorder %s15, 3
      %p182 = pnand %p180, %p181
      %p183 = pneg %p182
      // Predicated region
      $region9: #{flash_self_attention.1} parent=5 // pred_check
        _
      $region10: #{flash_self_attention.1} parent=5 // pred_check_branch
        %185 = sbr.rel (%p182) target = $region12
      $region11: #{flash_self_attention.1} parent=5 // pred_region
        %s186 = ssub.s32 %s15, 1
        // Predicated region
        $region13: #{flash_self_attention.1} parent=11 // pred_check
          %p187 = pneg %p62
        $region14: #{flash_self_attention.1} parent=11 // pred_check_branch
          %189 = sbr.rel (%p187) target = $region16
        $region15: #{flash_self_attention.1} parent=11 // pred_region
          _
        $region16: #{flash_self_attention.1} parent=11 // pred_fallthru
          _
        // Predicated region
        $region17: #{flash_self_attention.1} parent=11 // pred_check
          %p190 = pneg %p83
        $region18: #{flash_self_attention.1} parent=11 // pred_check_branch
          %192 = sbr.rel (%p190) target = $region20
        $region19: #{flash_self_attention.1} parent=11 // pred_region
          _
        $region20: #{flash_self_attention.1} parent=11 // pred_fallthru
          _
        // Predicated region
        $region21: #{flash_self_attention.1} parent=11 // pred_check
          %p193 = pneg %p104
        $region22: #{flash_self_attention.1} parent=11 // pred_check_branch
          %195 = sbr.rel (%p193) target = $region24
        $region23: #{flash_self_attention.1} parent=11 // pred_region
          _
        $region24: #{flash_self_attention.1} parent=11 // pred_fallthru
          _
        // Predicated region
        $region25: #{flash_self_attention.1} parent=11 // pred_check
          %p196 = pneg %p125
        $region26: #{flash_self_attention.1} parent=11 // pred_check_branch
          %198 = sbr.rel (%p196) target = $region28
        $region27: #{flash_self_attention.1} parent=11 // pred_region
          _
        $region28: #{flash_self_attention.1} parent=11 // pred_fallthru
          _
        // Predicated region
        $region29: #{flash_self_attention.1} parent=11 // pred_check
          %p199 = pneg %p146
        $region30: #{flash_self_attention.1} parent=11 // pred_check_branch
          %201 = sbr.rel (%p199) target = $region32
        $region31: #{flash_self_attention.1} parent=11 // pred_region
          _
        $region32: #{flash_self_attention.1} parent=11 // pred_fallthru
          _
      $region12: #{flash_self_attention.1} parent=5 // pred_fallthru
        _
      %p202 = scmp.lt.s32.totalorder %s15, 2
      // Predicated region
      $region33: #{flash_self_attention.1} parent=5 // pred_check
        %p203 = pneg %p202
      $region34: #{flash_self_attention.1} parent=5 // pred_check_branch
        %205 = sbr.rel (%p203) target = $region36
      $region35: #{flash_self_attention.1} parent=5 // pred_region
        // Predicated region
        $region37: #{flash_self_attention.1} parent=35 // pred_check
          %p206 = pneg %p35
        $region38: #{flash_self_attention.1} parent=35 // pred_check_branch
          %208 = sbr.rel (%p206) target = $region40
        $region39: #{flash_self_attention.1} parent=35 // pred_region
          %s209 = smul.u32 2, %s15
          %p210 = scmp.lt.s32.totalorder %s209, 3
          %s211 = scalar_select %p210, %s209, 3
          %s212 = smul.addr %s211, 4
          %s213 = scalar_lea.vmem %s0, %s212
          %s214 = smul.u32 2, %s15
        $region40: #{flash_self_attention.1} parent=35 // pred_fallthru
          _
      $region36: #{flash_self_attention.1} parent=5 // pred_fallthru
        _
      %p215 = scmp.le.s32.totalorder 1, %s15
      %p216 = scmp.lt.s32.totalorder %s15, 3
      %p217 = pnand %p215, %p216
      %p218 = pneg %p217
      // Predicated region
      $region41: #{flash_self_attention.1} parent=5 // pred_check
        _
      $region42: #{flash_self_attention.1} parent=5 // pred_check_branch
        %220 = sbr.rel (%p217) target = $region44
      $region43: #{flash_self_attention.1} parent=5 // pred_region
        %s221 = ssub.s32 %s15, 1
        %s222 = smul.u32 2, %s20
        %p223 = scmp.lt.s32.totalorder %s222, 3
        %s224 = scalar_select %p223, %s222, 3
        %s225 = smul.addr %s224, 4
        %s226 = scalar_lea.vmem %s0, %s225
        %p227 = pneg %p41
        %p228 = pneg %p38
        %p229 = pneg %p62
        %p230 = pneg %p59
        %p231 = pneg %p83
        %p232 = pneg %p80
        %p233 = pneg %p104
        %p234 = pneg %p101
        %p235 = pneg %p125
        %p236 = pneg %p122
        %p237 = pneg %p146
        %p238 = pneg %p143
        %p239 = pneg %p172
        %p240 = pneg %p169
        %s241 = sand.u32 %s159, 1
        %s242 = scalar_lea.sflag [#allocation3], %s241
        %s243 = sand.u32 %s159, 1
        %s244 = smul.addr %s243, 16
        %s245 = scalar_lea.vmem [#allocation2], %s244
        %s246 = smul.u32 2, %s20
        %p247 = scmp.lt.s32.totalorder %s246, 3
        %s248 = scalar_select %p247, %s246, 3
        %s249 = smul.addr %s248, 4
        %s250 = scalar_lea.vmem %s0, %s249
        %s251 = smul.u32 2, %s20
        %s252 = smul.u32 2, %s20
        %v254 = vld [vmem:[%s250] sm:$0xf]
        %v255 = vld [vmem:[%s250 + $0x4] sm:$0xf]
        %v256 = vld [vmem:[%s1] sm:$0xff]
        %v257 = vld [vmem:[%s1 + $0x8] sm:$0xff]
        %v258 = vld [vmem:[%s1 + $0x10] sm:$0xff]
        %v259 = vld [vmem:[%s1 + $0x18] sm:$0xff]
        %v260 = vld [vmem:[%s1 + $0x20] sm:$0xff]
        %v261 = vld [vmem:[%s1 + $0x28] sm:$0xff]
        %v262 = vld [vmem:[%s1 + $0x30] sm:$0xff]
        %v263 = vld [vmem:[%s1 + $0x38] sm:$0xff]
        %v264 = vld [vmem:[%s2] sm:$0x3]
        %v266 = vlaneseq
        %v267 = vshrl.u32 %v266, 7
        %v268 = vsub.s32 0, %v267
        %v269 = vrot.slane %v264, %v268
        %v270 = vlaneseq
        %v271 = vshrl.u32 %v270, 7
        %v272 = vsub.s32 1, %v271
        %v273 = vrot.slane %v264, %v272
        %v278 = vunpack.c.l.b16 %v254
        %v279 = vunpack.c.l.b16 %v255
        %v280 = vpack.c.b16 %v279, %v278
        %v289 = vunpack.c.l.b16 %v256
        %v290 = vunpack.c.h.b16 %v256
        %v291 = vunpack.c.l.b16 %v257
        %v292 = vunpack.c.h.b16 %v257
        %v293 = vunpack.c.l.b16 %v258
        %v294 = vunpack.c.h.b16 %v258
        %v295 = vunpack.c.l.b16 %v259
        %v296 = vunpack.c.h.b16 %v259
        %v297 = vunpack.c.l.b16 %v260
        %v298 = vunpack.c.h.b16 %v260
        %v299 = vunpack.c.l.b16 %v261
        %v300 = vunpack.c.h.b16 %v261
        %v301 = vunpack.c.l.b16 %v262
        %v302 = vunpack.c.h.b16 %v262
        %v303 = vunpack.c.l.b16 %v263
        %v304 = vunpack.c.h.b16 %v263
        %v305 = vpack.c.b16 %v291, %v289
        %v306 = vpack.c.b16 %v292, %v290
        %v307 = vpack.c.b16 %v295, %v293
        %v308 = vpack.c.b16 %v296, %v294
        %v309 = vpack.c.b16 %v299, %v297
        %v310 = vpack.c.b16 %v300, %v298
        %v311 = vpack.c.b16 %v303, %v301
        %v312 = vpack.c.b16 %v304, %v302
        %vm321 = vcmask 523264
        %v323 = vsel %vm321, %v280, 0
        %325 = vmatprep.subr.bf16.mxu0 %v306
        %326 = vmatpush1.bf16.msra.mxu0 %v305
        %327 = vmatprep.subr.bf16.mxu0 %v308
        %328 = vmatpush1.bf16.msra.mxu0 %v307
        %329 = vmatprep.subr.bf16.mxu0 %v310
        %330 = vmatpush1.bf16.msra.mxu0 %v309
        %331 = vmatprep.subr.bf16.mxu0 %v312
        %332 = vmatpush1.bf16.msra.mxu0 %v311
        %333 = vmatprep.subr.bf16.mxu0 0
        %334 = vmatpush1.bf16.msra.mxu0 0
        %335 = vmatprep.subr.bf16.mxu0 0
        %336 = vmatpush1.bf16.msra.mxu0 0
        %337 = vmatprep.subr.bf16.mxu0 0
        %338 = vmatpush1.bf16.msra.mxu0 0
        %339 = vmatprep.subr.bf16.mxu0 0
        %340 = vmatpush1.bf16.msra.mxu0 0
        %341 = vmatprep.subr.bf16.mxu0 0
        %342 = vmatpush1.bf16.msra.mxu0 0
        %343 = vmatprep.subr.bf16.mxu0 0
        %344 = vmatpush1.bf16.msra.mxu0 0
        %345 = vmatprep.subr.bf16.mxu0 0
        %346 = vmatpush1.bf16.msra.mxu0 0
        %347 = vmatprep.subr.bf16.mxu0 0
        %348 = vmatpush1.bf16.msra.mxu0 0
        %349 = vmatprep.subr.bf16.mxu0 0
        %350 = vmatpush1.bf16.msra.mxu0 0
        %351 = vmatprep.subr.bf16.mxu0 0
        %352 = vmatpush1.bf16.msra.mxu0 0
        %353 = vmatprep.subr.bf16.mxu0 0
        %354 = vmatpush1.bf16.msra.mxu0 0
        %355 = vmatprep.subr.bf16.mxu0 0
        %356 = vmatpush1.bf16.msra.mxu0 0
        %357 = vmatprep.mubr.bf16.mxu0 0
        %358 = vmatmul.mubr.bf16.gmra.mrb[0].mxu0 %v323
        %v359 = vpop.f32.mrb[0].mxu0
        %v360 = vadd.f32 %v269, %v359
        %v361 = vpop.f32.mrb[0].mxu0
        %v362 = vadd.f32 %v273, %v361
        %v363 = vpop.f32.mrb[0].mxu0
        %v364 = vadd.f32 %v269, %v363
        %v365 = vpop.f32.mrb[0].mxu0
        %v366 = vadd.f32 %v273, %v365
        %367 = vdwg.mxu0
        %v368 = vld [vmem:[%s3] sm:$0xf]
        %v369 = vld [vmem:[%s3 + $0x4] sm:$0xf]
        %v370 = vld [vmem:[%s3 + $0x8] sm:$0xf]
        %v371 = vld [vmem:[%s3 + $0xc] sm:$0xf]
        %v372 = vld [vmem:[%s3 + $0x10] sm:$0xf]
        %v373 = vld [vmem:[%s3 + $0x14] sm:$0xf]
        %v374 = vld [vmem:[%s3 + $0x18] sm:$0xf]
        %v375 = vld [vmem:[%s3 + $0x1c] sm:$0xf]
        %378 = vrot.lane.b32.xlu0 %v360, 64
        %v379 = vpop.permute.xlu0 %378
        %380 = vrot.lane.b32.xlu0 %v364, 64
        %v381 = vpop.permute.xlu0 %380
        %v384 = vmul.f32 %v360, %v379
        %v385 = vmul.f32 %v364, %v381
        %v386 = vpack.c.bf16 %v385, %v384
        %v395 = vunpack.c.l.b16 %v368
        %v396 = vunpack.c.l.b16 %v369
        %v397 = vunpack.c.l.b16 %v370
        %v398 = vunpack.c.l.b16 %v371
        %v399 = vunpack.c.l.b16 %v372
        %v400 = vunpack.c.l.b16 %v373
        %v401 = vunpack.c.l.b16 %v374
        %v402 = vunpack.c.l.b16 %v375
        %v403 = vpack.c.b16 %v396, %v395
        %v404 = vpack.c.b16 %v398, %v397
        %v405 = vpack.c.b16 %v400, %v399
        %v406 = vpack.c.b16 %v402, %v401
        %v412 = vsel %vm321, %v386, 0
        %414 = vmatprep.subr.bf16.mxu0 0
        %415 = vmatpush1.bf16.msra.mxu0 %v403
        %416 = vmatprep.subr.bf16.mxu0 0
        %417 = vmatpush1.bf16.msra.mxu0 %v404
        %418 = vmatprep.subr.bf16.mxu0 0
        %419 = vmatpush1.bf16.msra.mxu0 %v405
        %420 = vmatprep.subr.bf16.mxu0 0
        %421 = vmatpush1.bf16.msra.mxu0 %v406
        %422 = vmatprep.subr.bf16.mxu0 0
        %423 = vmatpush1.bf16.msra.mxu0 0
        %424 = vmatprep.subr.bf16.mxu0 0
        %425 = vmatpush1.bf16.msra.mxu0 0
        %426 = vmatprep.subr.bf16.mxu0 0
        %427 = vmatpush1.bf16.msra.mxu0 0
        %428 = vmatprep.subr.bf16.mxu0 0
        %429 = vmatpush1.bf16.msra.mxu0 0
        %430 = vmatprep.subr.bf16.mxu0 0
        %431 = vmatpush1.bf16.msra.mxu0 0
        %432 = vmatprep.subr.bf16.mxu0 0
        %433 = vmatpush1.bf16.msra.mxu0 0
        %434 = vmatprep.subr.bf16.mxu0 0
        %435 = vmatpush1.bf16.msra.mxu0 0
        %436 = vmatprep.subr.bf16.mxu0 0
        %437 = vmatpush1.bf16.msra.mxu0 0
        %438 = vmatprep.subr.bf16.mxu0 0
        %439 = vmatpush1.bf16.msra.mxu0 0
        %440 = vmatprep.subr.bf16.mxu0 0
        %441 = vmatpush1.bf16.msra.mxu0 0
        %442 = vmatprep.subr.bf16.mxu0 0
        %443 = vmatpush1.bf16.msra.mxu0 0
        %444 = vmatprep.subr.bf16.mxu0 0
        %445 = vmatpush1.bf16.msra.mxu0 0
        %446 = vmatprep.mubr.bf16.mxu0 0
        %447 = vmatmul.mubr.bf16.gmra.mrb[0].mxu0 %v412
        %v448 = vpop.f32.mrb[0].mxu0
        %v449 = vadd.f32 0.0, %v448
        %v450 = vpop.f32.mrb[0].mxu0
        %v451 = vpop.f32.mrb[0].mxu0
        %v452 = vadd.f32 0.0, %v451
        %v453 = vpop.f32.mrb[0].mxu0
        %454 = vdwg.mxu0
        %455 = vrot.lane.b32.xlu0 %v360, 56
        %v456 = vpop.permute.xlu0 %455
        %457 = vrot.lane.b32.xlu0 %v364, 56
        %v458 = vpop.permute.xlu0 %457
        %461 = vrot.lane.b32.xlu0 %v360, 120
        %v462 = vpop.permute.xlu0 %461
        %463 = vrot.lane.b32.xlu0 %v364, 120
        %v464 = vpop.permute.xlu0 %463
        %vm467 = vcmask 457728
        %v468 = vsel %vm467, %v456, %v462
        %v469 = vsel %vm467, %v458, %v464
        %v470 = vmul.f32 %v360, %v468
        %v471 = vmul.f32 %v364, %v469
        %v472 = vpack.c.bf16 %v471, %v470
        %v474 = vsel %vm321, %v472, 0
        %476 = vmatprep.subr.bf16.mxu0 0
        %477 = vmatpush1.bf16.msra.mxu0 %v403
        %478 = vmatprep.subr.bf16.mxu0 0
        %479 = vmatpush1.bf16.msra.mxu0 %v404
        %480 = vmatprep.subr.bf16.mxu0 0
        %481 = vmatpush1.bf16.msra.mxu0 %v405
        %482 = vmatprep.subr.bf16.mxu0 0
        %483 = vmatpush1.bf16.msra.mxu0 %v406
        %484 = vmatprep.subr.bf16.mxu0 0
        %485 = vmatpush1.bf16.msra.mxu0 0
        %486 = vmatprep.subr.bf16.mxu0 0
        %487 = vmatpush1.bf16.msra.mxu0 0
        %488 = vmatprep.subr.bf16.mxu0 0
        %489 = vmatpush1.bf16.msra.mxu0 0
        %490 = vmatprep.subr.bf16.mxu0 0
        %491 = vmatpush1.bf16.msra.mxu0 0
        %492 = vmatprep.subr.bf16.mxu0 0
        %493 = vmatpush1.bf16.msra.mxu0 0
        %494 = vmatprep.subr.bf16.mxu0 0
        %495 = vmatpush1.bf16.msra.mxu0 0
        %496 = vmatprep.subr.bf16.mxu0 0
        %497 = vmatpush1.bf16.msra.mxu0 0
        %498 = vmatprep.subr.bf16.mxu0 0
        %499 = vmatpush1.bf16.msra.mxu0 0
        %500 = vmatprep.subr.bf16.mxu0 0
        %501 = vmatpush1.bf16.msra.mxu0 0
        %502 = vmatprep.subr.bf16.mxu0 0
        %503 = vmatpush1.bf16.msra.mxu0 0
        %504 = vmatprep.subr.bf16.mxu0 0
        %505 = vmatpush1.bf16.msra.mxu0 0
        %506 = vmatprep.subr.bf16.mxu0 0
        %507 = vmatpush1.bf16.msra.mxu0 0
        %508 = vmatprep.mubr.bf16.mxu0 0
        %509 = vmatmul.mubr.bf16.gmra.mrb[0].mxu0 %v474
        %v510 = vpop.f32.mrb[0].mxu0
        %v511 = vadd.f32 0.0, %v510
        %v512 = vpop.f32.mrb[0].mxu0
        %v513 = vpop.f32.mrb[0].mxu0
        %v514 = vadd.f32 0.0, %v513
        %v515 = vpop.f32.mrb[0].mxu0
        %516 = vdwg.mxu0
        %517 = vrot.lane.b32.xlu0 %v360, 48
        %v518 = vpop.permute.xlu0 %517
        %519 = vrot.lane.b32.xlu0 %v364, 48
        %v520 = vpop.permute.xlu0 %519
        %523 = vrot.lane.b32.xlu0 %v360, 112
        %v524 = vpop.permute.xlu0 %523
        %525 = vrot.lane.b32.xlu0 %v364, 112
        %v526 = vpop.permute.xlu0 %525
        %vm529 = vcmask 392192
        %v530 = vsel %vm529, %v518, %v524
        %v531 = vsel %vm529, %v520, %v526
        %v532 = vmul.f32 %v360, %v530
        %v533 = vmul.f32 %v364, %v531
        %v534 = vpack.c.bf16 %v533, %v532
        %v536 = vsel %vm321, %v534, 0
        %538 = vmatprep.subr.bf16.mxu0 0
        %539 = vmatpush1.bf16.msra.mxu0 %v403
        %540 = vmatprep.subr.bf16.mxu0 0
        %541 = vmatpush1.bf16.msra.mxu0 %v404
        %542 = vmatprep.subr.bf16.mxu0 0
        %543 = vmatpush1.bf16.msra.mxu0 %v405
        %544 = vmatprep.subr.bf16.mxu0 0
        %545 = vmatpush1.bf16.msra.mxu0 %v406
        %546 = vmatprep.subr.bf16.mxu0 0
        %547 = vmatpush1.bf16.msra.mxu0 0
        %548 = vmatprep.subr.bf16.mxu0 0
        %549 = vmatpush1.bf16.msra.mxu0 0
        %550 = vmatprep.subr.bf16.mxu0 0
        %551 = vmatpush1.bf16.msra.mxu0 0
        %552 = vmatprep.subr.bf16.mxu0 0
        %553 = vmatpush1.bf16.msra.mxu0 0
        %554 = vmatprep.subr.bf16.mxu0 0
        %555 = vmatpush1.bf16.msra.mxu0 0
        %556 = vmatprep.subr.bf16.mxu0 0
        %557 = vmatpush1.bf16.msra.mxu0 0
        %558 = vmatprep.subr.bf16.mxu0 0
        %559 = vmatpush1.bf16.msra.mxu0 0
        %560 = vmatprep.subr.bf16.mxu0 0
        %561 = vmatpush1.bf16.msra.mxu0 0
        %562 = vmatprep.subr.bf16.mxu0 0
        %563 = vmatpush1.bf16.msra.mxu0 0
        %564 = vmatprep.subr.bf16.mxu0 0
        %565 = vmatpush1.bf16.msra.mxu0 0
        %566 = vmatprep.subr.bf16.mxu0 0
        %567 = vmatpush1.bf16.msra.mxu0 0
        %568 = vmatprep.subr.bf16.mxu0 0
        %569 = vmatpush1.bf16.msra.mxu0 0
        %570 = vmatprep.mubr.bf16.mxu0 0
        %571 = vmatmul.mubr.bf16.gmra.mrb[0].mxu0 %v536
        %v572 = vpop.f32.mrb[0].mxu0
        %v573 = vadd.f32 0.0, %v572
        %v574 = vpop.f32.mrb[0].mxu0
        %v575 = vpop.f32.mrb[0].mxu0
        %v576 = vadd.f32 0.0, %v575
        %v577 = vpop.f32.mrb[0].mxu0
        %578 = vdwg.mxu0
        %579 = vrot.lane.b32.xlu0 %v360, 40
        %v580 = vpop.permute.xlu0 %579
        %581 = vrot.lane.b32.xlu0 %v364, 40
        %v582 = vpop.permute.xlu0 %581
        %585 = vrot.lane.b32.xlu0 %v360, 104
        %v586 = vpop.permute.xlu0 %585
        %587 = vrot.lane.b32.xlu0 %v364, 104
        %v588 = vpop.permute.xlu0 %587
        %vm591 = vcmask 326656
        %v592 = vsel %vm591, %v580, %v586
        %v593 = vsel %vm591, %v582, %v588
        %v594 = vmul.f32 %v360, %v592
        %v595 = vmul.f32 %v364, %v593
        %v596 = vpack.c.bf16 %v595, %v594
        %v598 = vsel %vm321, %v596, 0
        %600 = vmatprep.subr.bf16.mxu0 0
        %601 = vmatpush1.bf16.msra.mxu0 %v403
        %602 = vmatprep.subr.bf16.mxu0 0
        %603 = vmatpush1.bf16.msra.mxu0 %v404
        %604 = vmatprep.subr.bf16.mxu0 0
        %605 = vmatpush1.bf16.msra.mxu0 %v405
        %606 = vmatprep.subr.bf16.mxu0 0
        %607 = vmatpush1.bf16.msra.mxu0 %v406
        %608 = vmatprep.subr.bf16.mxu0 0
        %609 = vmatpush1.bf16.msra.mxu0 0
        %610 = vmatprep.subr.bf16.mxu0 0
        %611 = vmatpush1.bf16.msra.mxu0 0
        %612 = vmatprep.subr.bf16.mxu0 0
        %613 = vmatpush1.bf16.msra.mxu0 0
        %614 = vmatprep.subr.bf16.mxu0 0
        %615 = vmatpush1.bf16.msra.mxu0 0
        %616 = vmatprep.subr.bf16.mxu0 0
        %617 = vmatpush1.bf16.msra.mxu0 0
        %618 = vmatprep.subr.bf16.mxu0 0
        %619 = vmatpush1.bf16.msra.mxu0 0
        %620 = vmatprep.subr.bf16.mxu0 0
        %621 = vmatpush1.bf16.msra.mxu0 0
        %622 = vmatprep.subr.bf16.mxu0 0
        %623 = vmatpush1.bf16.msra.mxu0 0
        %624 = vmatprep.subr.bf16.mxu0 0
        %625 = vmatpush1.bf16.msra.mxu0 0
        %626 = vmatprep.subr.bf16.mxu0 0
        %627 = vmatpush1.bf16.msra.mxu0 0
        %628 = vmatprep.subr.bf16.mxu0 0
        %629 = vmatpush1.bf16.msra.mxu0 0
        %630 = vmatprep.subr.bf16.mxu0 0
        %631 = vmatpush1.bf16.msra.mxu0 0
        %632 = vmatprep.mubr.bf16.mxu0 0
        %633 = vmatmul.mubr.bf16.gmra.mrb[0].mxu0 %v598
        %v634 = vpop.f32.mrb[0].mxu0
        %v635 = vadd.f32 0.0, %v634
        %v636 = vpop.f32.mrb[0].mxu0
        %v637 = vpop.f32.mrb[0].mxu0
        %v638 = vadd.f32 0.0, %v637
        %v639 = vpop.f32.mrb[0].mxu0
        %640 = vdwg.mxu0
        %641 = vrot.lane.b32.xlu0 %v360, 32
        %v642 = vpop.permute.xlu0 %641
        %643 = vrot.lane.b32.xlu0 %v364, 32
        %v644 = vpop.permute.xlu0 %643
        %647 = vrot.lane.b32.xlu0 %v360, 96
        %v648 = vpop.permute.xlu0 %647
        %649 = vrot.lane.b32.xlu0 %v364, 96
        %v650 = vpop.permute.xlu0 %649
        %vm653 = vcmask 261120
        %v654 = vsel %vm653, %v642, %v648
        %v655 = vsel %vm653, %v644, %v650
        %v656 = vmul.f32 %v360, %v654
        %v657 = vmul.f32 %v364, %v655
        %v658 = vpack.c.bf16 %v657, %v656
        %v660 = vsel %vm321, %v658, 0
        %662 = vmatprep.subr.bf16.mxu0 0
        %663 = vmatpush1.bf16.msra.mxu0 %v403
        %664 = vmatprep.subr.bf16.mxu0 0
        %665 = vmatpush1.bf16.msra.mxu0 %v404
        %666 = vmatprep.subr.bf16.mxu0 0
        %667 = vmatpush1.bf16.msra.mxu0 %v405
        %668 = vmatprep.subr.bf16.mxu0 0
        %669 = vmatpush1.bf16.msra.mxu0 %v406
        %670 = vmatprep.subr.bf16.mxu0 0
        %671 = vmatpush1.bf16.msra.mxu0 0
        %672 = vmatprep.subr.bf16.mxu0 0
        %673 = vmatpush1.bf16.msra.mxu0 0
        %674 = vmatprep.subr.bf16.mxu0 0
        %675 = vmatpush1.bf16.msra.mxu0 0
        %676 = vmatprep.subr.bf16.mxu0 0
        %677 = vmatpush1.bf16.msra.mxu0 0
        %678 = vmatprep.subr.bf16.mxu0 0
        %679 = vmatpush1.bf16.msra.mxu0 0
        %680 = vmatprep.subr.bf16.mxu0 0
        %681 = vmatpush1.bf16.msra.mxu0 0
        %682 = vmatprep.subr.bf16.mxu0 0
        %683 = vmatpush1.bf16.msra.mxu0 0
        %684 = vmatprep.subr.bf16.mxu0 0
        %685 = vmatpush1.bf16.msra.mxu0 0
        %686 = vmatprep.subr.bf16.mxu0 0
        %687 = vmatpush1.bf16.msra.mxu0 0
        %688 = vmatprep.subr.bf16.mxu0 0
        %689 = vmatpush1.bf16.msra.mxu0 0
        %690 = vmatprep.subr.bf16.mxu0 0
        %691 = vmatpush1.bf16.msra.mxu0 0
        %692 = vmatprep.subr.bf16.mxu0 0
        %693 = vmatpush1.bf16.msra.mxu0 0
        %694 = vmatprep.mubr.bf16.mxu0 0
        %695 = vmatmul.mubr.bf16.gmra.mrb[0].mxu0 %v660
        %v696 = vpop.f32.mrb[0].mxu0
        %v697 = vadd.f32 0.0, %v696
        %v698 = vpop.f32.mrb[0].mxu0
        %v699 = vpop.f32.mrb[0].mxu0
        %v700 = vadd.f32 0.0, %v699
        %v701 = vpop.f32.mrb[0].mxu0
        %702 = vdwg.mxu0
        %703 = vrot.lane.b32.xlu0 %v360, 24
        %v704 = vpop.permute.xlu0 %703
        %705 = vrot.lane.b32.xlu0 %v364, 24
        %v706 = vpop.permute.xlu0 %705
        %709 = vrot.lane.b32.xlu0 %v360, 88
        %v710 = vpop.permute.xlu0 %709
        %711 = vrot.lane.b32.xlu0 %v364, 88
        %v712 = vpop.permute.xlu0 %711
        %vm715 = vcmask 195584
        %v716 = vsel %vm715, %v704, %v710
        %v717 = vsel %vm715, %v706, %v712
        %v718 = vmul.f32 %v360, %v716
        %v719 = vmul.f32 %v364, %v717
        %v720 = vpack.c.bf16 %v719, %v718
        %v722 = vsel %vm321, %v720, 0
        %724 = vmatprep.subr.bf16.mxu0 0
        %725 = vmatpush1.bf16.msra.mxu0 %v403
        %726 = vmatprep.subr.bf16.mxu0 0
        %727 = vmatpush1.bf16.msra.mxu0 %v404
        %728 = vmatprep.subr.bf16.mxu0 0
        %729 = vmatpush1.bf16.msra.mxu0 %v405
        %730 = vmatprep.subr.bf16.mxu0 0
        %731 = vmatpush1.bf16.msra.mxu0 %v406
        %732 = vmatprep.subr.bf16.mxu0 0
        %733 = vmatpush1.bf16.msra.mxu0 0
        %734 = vmatprep.subr.bf16.mxu0 0
        %735 = vmatpush1.bf16.msra.mxu0 0
        %736 = vmatprep.subr.bf16.mxu0 0
        %737 = vmatpush1.bf16.msra.mxu0 0
        %738 = vmatprep.subr.bf16.mxu0 0
        %739 = vmatpush1.bf16.msra.mxu0 0
        %740 = vmatprep.subr.bf16.mxu0 0
        %741 = vmatpush1.bf16.msra.mxu0 0
        %742 = vmatprep.subr.bf16.mxu0 0
        %743 = vmatpush1.bf16.msra.mxu0 0
        %744 = vmatprep.subr.bf16.mxu0 0
        %745 = vmatpush1.bf16.msra.mxu0 0
        %746 = vmatprep.subr.bf16.mxu0 0
        %747 = vmatpush1.bf16.msra.mxu0 0
        %748 = vmatprep.subr.bf16.mxu0 0
        %749 = vmatpush1.bf16.msra.mxu0 0
        %750 = vmatprep.subr.bf16.mxu0 0
        %751 = vmatpush1.bf16.msra.mxu0 0
        %752 = vmatprep.subr.bf16.mxu0 0
        %753 = vmatpush1.bf16.msra.mxu0 0
        %754 = vmatprep.subr.bf16.mxu0 0
        %755 = vmatpush1.bf16.msra.mxu0 0
        %756 = vmatprep.mubr.bf16.mxu0 0
        %757 = vmatmul.mubr.bf16.gmra.mrb[0].mxu0 %v722
        %v758 = vpop.f32.mrb[0].mxu0
        %v759 = vadd.f32 0.0, %v758
        %v760 = vpop.f32.mrb[0].mxu0
        %v761 = vpop.f32.mrb[0].mxu0
        %v762 = vadd.f32 0.0, %v761
        %v763 = vpop.f32.mrb[0].mxu0
        %764 = vdwg.mxu0
        %765 = vrot.lane.b32.xlu0 %v360, 16
        %v766 = vpop.permute.xlu0 %765
        %767 = vrot.lane.b32.xlu0 %v364, 16
        %v768 = vpop.permute.xlu0 %767
        %771 = vrot.lane.b32.xlu0 %v360, 80
        %v772 = vpop.permute.xlu0 %771
        %773 = vrot.lane.b32.xlu0 %v364, 80
        %v774 = vpop.permute.xlu0 %773
        %vm777 = vcmask 130048
        %v778 = vsel %vm777, %v766, %v772
        %v779 = vsel %vm777, %v768, %v774
        %v780 = vmul.f32 %v360, %v778
        %v781 = vmul.f32 %v364, %v779
        %v782 = vpack.c.bf16 %v781, %v780
        %v784 = vsel %vm321, %v782, 0
        %786 = vmatprep.subr.bf16.mxu0 0
        %787 = vmatpush1.bf16.msra.mxu0 %v403
        %788 = vmatprep.subr.bf16.mxu0 0
        %789 = vmatpush1.bf16.msra.mxu0 %v404
        %790 = vmatprep.subr.bf16.mxu0 0
        %791 = vmatpush1.bf16.msra.mxu0 %v405
        %792 = vmatprep.subr.bf16.mxu0 0
        %793 = vmatpush1.bf16.msra.mxu0 %v406
        %794 = vmatprep.subr.bf16.mxu0 0
        %795 = vmatpush1.bf16.msra.mxu0 0
        %796 = vmatprep.subr.bf16.mxu0 0
        %797 = vmatpush1.bf16.msra.mxu0 0
        %798 = vmatprep.subr.bf16.mxu0 0
        %799 = vmatpush1.bf16.msra.mxu0 0
        %800 = vmatprep.subr.bf16.mxu0 0
        %801 = vmatpush1.bf16.msra.mxu0 0
        %802 = vmatprep.subr.bf16.mxu0 0
        %803 = vmatpush1.bf16.msra.mxu0 0
        %804 = vmatprep.subr.bf16.mxu0 0
        %805 = vmatpush1.bf16.msra.mxu0 0
        %806 = vmatprep.subr.bf16.mxu0 0
        %807 = vmatpush1.bf16.msra.mxu0 0
        %808 = vmatprep.subr.bf16.mxu0 0
        %809 = vmatpush1.bf16.msra.mxu0 0
        %810 = vmatprep.subr.bf16.mxu0 0
        %811 = vmatpush1.bf16.msra.mxu0 0
        %812 = vmatprep.subr.bf16.mxu0 0
        %813 = vmatpush1.bf16.msra.mxu0 0
        %814 = vmatprep.subr.bf16.mxu0 0
        %815 = vmatpush1.bf16.msra.mxu0 0
        %816 = vmatprep.subr.bf16.mxu0 0
        %817 = vmatpush1.bf16.msra.mxu0 0
        %818 = vmatprep.mubr.bf16.mxu0 0
        %819 = vmatmul.mubr.bf16.gmra.mrb[0].mxu0 %v784
        %v820 = vpop.f32.mrb[0].mxu0
        %v821 = vadd.f32 0.0, %v820
        %v822 = vpop.f32.mrb[0].mxu0
        %v823 = vpop.f32.mrb[0].mxu0
        %v824 = vadd.f32 0.0, %v823
        %v825 = vpop.f32.mrb[0].mxu0
        %826 = vdwg.mxu0
        %827 = vrot.lane.b32.xlu0 %v360, 8
        %v828 = vpop.permute.xlu0 %827
        %829 = vrot.lane.b32.xlu0 %v364, 8
        %v830 = vpop.permute.xlu0 %829
        %833 = vrot.lane.b32.xlu0 %v360, 72
        %v834 = vpop.permute.xlu0 %833
        %835 = vrot.lane.b32.xlu0 %v364, 72
        %v836 = vpop.permute.xlu0 %835
        %vm839 = vcmask 64512
        %v840 = vsel %vm839, %v828, %v834
        %v841 = vsel %vm839, %v830, %v836
        %v842 = vmul.f32 %v360, %v840
        %v843 = vmul.f32 %v364, %v841
        %v844 = vpack.c.bf16 %v843, %v842
        %v846 = vsel %vm321, %v844, 0
        %848 = vmatprep.subr.bf16.mxu0 0
        %849 = vmatpush1.bf16.msra.mxu0 %v403
        %850 = vmatprep.subr.bf16.mxu0 0
        %851 = vmatpush1.bf16.msra.mxu0 %v404
        %852 = vmatprep.subr.bf16.mxu0 0
        %853 = vmatpush1.bf16.msra.mxu0 %v405
        %854 = vmatprep.subr.bf16.mxu0 0
        %855 = vmatpush1.bf16.msra.mxu0 %v406
        %856 = vmatprep.subr.bf16.mxu0 0
        %857 = vmatpush1.bf16.msra.mxu0 0
        %858 = vmatprep.subr.bf16.mxu0 0
        %859 = vmatpush1.bf16.msra.mxu0 0
        %860 = vmatprep.subr.bf16.mxu0 0
        %861 = vmatpush1.bf16.msra.mxu0 0
        %862 = vmatprep.subr.bf16.mxu0 0
        %863 = vmatpush1.bf16.msra.mxu0 0
        %864 = vmatprep.subr.bf16.mxu0 0
        %865 = vmatpush1.bf16.msra.mxu0 0
        %866 = vmatprep.subr.bf16.mxu0 0
        %867 = vmatpush1.bf16.msra.mxu0 0
        %868 = vmatprep.subr.bf16.mxu0 0
        %869 = vmatpush1.bf16.msra.mxu0 0
        %870 = vmatprep.subr.bf16.mxu0 0
        %871 = vmatpush1.bf16.msra.mxu0 0
        %872 = vmatprep.subr.bf16.mxu0 0
        %873 = vmatpush1.bf16.msra.mxu0 0
        %874 = vmatprep.subr.bf16.mxu0 0
        %875 = vmatpush1.bf16.msra.mxu0 0
        %876 = vmatprep.subr.bf16.mxu0 0
        %877 = vmatpush1.bf16.msra.mxu0 0
        %878 = vmatprep.subr.bf16.mxu0 0
        %879 = vmatpush1.bf16.msra.mxu0 0
        %880 = vmatprep.mubr.bf16.mxu0 0
        %881 = vmatmul.mubr.bf16.gmra.mrb[0].mxu0 %v846
        %v882 = vpop.f32.mrb[0].mxu0
        %v883 = vadd.f32 0.0, %v882
        %v884 = vpop.f32.mrb[0].mxu0
        %v885 = vpop.f32.mrb[0].mxu0
        %v886 = vadd.f32 0.0, %v885
        %v887 = vpop.f32.mrb[0].mxu0
        %888 = vdwg.mxu0
        %v889 = vmax.f32 %v449, %v511
        %v890 = vmax.f32 %v452, %v514
        %v891 = vmax.f32 %v889, %v573
        %v892 = vmax.f32 %v890, %v576
        %v893 = vmax.f32 %v891, %v635
        %v894 = vmax.f32 %v892, %v638
        %v895 = vmax.f32 %v893, %v697
        %v896 = vmax.f32 %v894, %v700
        %v897 = vmax.f32 %v895, %v759
        %v898 = vmax.f32 %v896, %v762
        %v899 = vmax.f32 %v897, %v821
        %v900 = vmax.f32 %v898, %v824
        %v901 = vmax.f32 %v899, %v883
        %v902 = vmax.f32 %v900, %v886
        %v903 = vsub.f32 %v449, %v901
        %v904 = vsub.f32 %v452, %v902
        %v905 = vmul.f32 %v903, 1.442695
        %v906 = vpow.pop %v905
        %v907 = vmul.f32 %v904, 1.442695
        %v908 = vpow.pop %v907
        %v909 = vsub.f32 %v511, %v901
        %v910 = vsub.f32 %v514, %v902
        %v911 = vmul.f32 %v909, 1.442695
        %v912 = vpow.pop %v911
        %v913 = vmul.f32 %v910, 1.442695
        %v914 = vpow.pop %v913
        %v915 = vsub.f32 %v573, %v901
        %v916 = vsub.f32 %v576, %v902
        %v917 = vmul.f32 %v915, 1.442695
        %v918 = vpow.pop %v917
        %v919 = vmul.f32 %v916, 1.442695
        %v920 = vpow.pop %v919
        %v921 = vsub.f32 %v635, %v901
        %v922 = vsub.f32 %v638, %v902
        %v923 = vmul.f32 %v921, 1.442695
        %v924 = vpow.pop %v923
        %v925 = vmul.f32 %v922, 1.442695
        %v926 = vpow.pop %v925
        %v927 = vsub.f32 %v697, %v901
        %v928 = vsub.f32 %v700, %v902
        %v929 = vmul.f32 %v927, 1.442695
        %v930 = vpow.pop %v929
        %v931 = vmul.f32 %v928, 1.442695
        %v932 = vpow.pop %v931
        %v933 = vsub.f32 %v759, %v901
        %v934 = vsub.f32 %v762, %v902
        %v935 = vmul.f32 %v933, 1.442695
        %v936 = vpow.pop %v935
        %v937 = vmul.f32 %v934, 1.442695
        %v938 = vpow.pop %v937
        %v939 = vsub.f32 %v821, %v901
        %v940 = vsub.f32 %v824, %v902
        %v941 = vmul.f32 %v939, 1.442695
        %v942 = vpow.pop %v941
        %v943 = vmul.f32 %v940, 1.442695
        %v944 = vpow.pop %v943
        %v945 = vsub.f32 %v883, %v901
        %v946 = vsub.f32 %v886, %v902
        %v947 = vmul.f32 %v945, 1.442695
        %v948 = vpow.pop %v947
        %v949 = vmul.f32 %v946, 1.442695
        %v950 = vpow.pop %v949
        %v951 = vmul.f32 %v906, %v362
        %v952 = vmul.f32 %v908, %v366
        %v953 = vadd.f32 %v906, %v912
        %v954 = vadd.f32 %v908, %v914
        %957 = vrot.lane.b32.xlu0 %v362, 120
        %v958 = vpop.permute.xlu0 %957
        %959 = vrot.lane.b32.xlu0 %v366, 120
        %v960 = vpop.permute.xlu0 %959
        %963 = vrot.lane.b32.xlu0 %v362, 56
        %v964 = vpop.permute.xlu0 %963
        %965 = vrot.lane.b32.xlu0 %v366, 56
        %v966 = vpop.permute.xlu0 %965
        %v969 = vsel %vm467, %v958, %v964
        %v970 = vsel %vm467, %v960, %v966
        %v971 = vmul.f32 %v912, %v969
        %v972 = vmul.f32 %v914, %v970
        %v973 = vadd.f32 %v951, %v971
        %v974 = vadd.f32 %v952, %v972
        %v975 = vadd.f32 %v953, %v918
        %v976 = vadd.f32 %v954, %v920
        %977 = vrot.lane.b32.xlu0 %v362, 112
        %v978 = vpop.permute.xlu0 %977
        %979 = vrot.lane.b32.xlu0 %v366, 112
        %v980 = vpop.permute.xlu0 %979
        %983 = vrot.lane.b32.xlu0 %v362, 48
        %v984 = vpop.permute.xlu0 %983
        %985 = vrot.lane.b32.xlu0 %v366, 48
        %v986 = vpop.permute.xlu0 %985
        %v989 = vsel %vm529, %v978, %v984
        %v990 = vsel %vm529, %v980, %v986
        %v991 = vmul.f32 %v918, %v989
        %v992 = vmul.f32 %v920, %v990
        %v993 = vadd.f32 %v973, %v991
        %v994 = vadd.f32 %v974, %v992
        %v995 = vadd.f32 %v975, %v924
        %v996 = vadd.f32 %v976, %v926
        %997 = vrot.lane.b32.xlu0 %v362, 104
        %v998 = vpop.permute.xlu0 %997
        %999 = vrot.lane.b32.xlu0 %v366, 104
        %v1000 = vpop.permute.xlu0 %999
        %1003 = vrot.lane.b32.xlu0 %v362, 40
        %v1004 = vpop.permute.xlu0 %1003
        %1005 = vrot.lane.b32.xlu0 %v366, 40
        %v1006 = vpop.permute.xlu0 %1005
        %v1009 = vsel %vm591, %v998, %v1004
        %v1010 = vsel %vm591, %v1000, %v1006
        %v1011 = vmul.f32 %v924, %v1009
        %v1012 = vmul.f32 %v926, %v1010
        %v1013 = vadd.f32 %v993, %v1011
        %v1014 = vadd.f32 %v994, %v1012
        %v1015 = vadd.f32 %v995, %v930
        %v1016 = vadd.f32 %v996, %v932
        %1017 = vrot.lane.b32.xlu0 %v362, 96
        %v1018 = vpop.permute.xlu0 %1017
        %1019 = vrot.lane.b32.xlu0 %v366, 96
        %v1020 = vpop.permute.xlu0 %1019
        %1023 = vrot.lane.b32.xlu0 %v362, 32
        %v1024 = vpop.permute.xlu0 %1023
        %1025 = vrot.lane.b32.xlu0 %v366, 32
        %v1026 = vpop.permute.xlu0 %1025
        %v1029 = vsel %vm653, %v1018, %v1024
        %v1030 = vsel %vm653, %v1020, %v1026
        %v1031 = vmul.f32 %v930, %v1029
        %v1032 = vmul.f32 %v932, %v1030
        %v1033 = vadd.f32 %v1013, %v1031
        %v1034 = vadd.f32 %v1014, %v1032
        %v1035 = vadd.f32 %v1015, %v936
        %v1036 = vadd.f32 %v1016, %v938
        %1037 = vrot.lane.b32.xlu0 %v362, 88
        %v1038 = vpop.permute.xlu0 %1037
        %1039 = vrot.lane.b32.xlu0 %v366, 88
        %v1040 = vpop.permute.xlu0 %1039
        %1043 = vrot.lane.b32.xlu0 %v362, 24
        %v1044 = vpop.permute.xlu0 %1043
        %1045 = vrot.lane.b32.xlu0 %v366, 24
        %v1046 = vpop.permute.xlu0 %1045
        %v1049 = vsel %vm715, %v1038, %v1044
        %v1050 = vsel %vm715, %v1040, %v1046
        %v1051 = vmul.f32 %v936, %v1049
        %v1052 = vmul.f32 %v938, %v1050
        %v1053 = vadd.f32 %v1033, %v1051
        %v1054 = vadd.f32 %v1034, %v1052
        %v1055 = vadd.f32 %v1035, %v942
        %v1056 = vadd.f32 %v1036, %v944
        %1057 = vrot.lane.b32.xlu0 %v362, 80
        %v1058 = vpop.permute.xlu0 %1057
        %1059 = vrot.lane.b32.xlu0 %v366, 80
        %v1060 = vpop.permute.xlu0 %1059
        %1063 = vrot.lane.b32.xlu0 %v362, 16
        %v1064 = vpop.permute.xlu0 %1063
        %1065 = vrot.lane.b32.xlu0 %v366, 16
        %v1066 = vpop.permute.xlu0 %1065
        %v1069 = vsel %vm777, %v1058, %v1064
        %v1070 = vsel %vm777, %v1060, %v1066
        %v1071 = vmul.f32 %v942, %v1069
        %v1072 = vmul.f32 %v944, %v1070
        %v1073 = vadd.f32 %v1053, %v1071
        %v1074 = vadd.f32 %v1054, %v1072
        %v1075 = vadd.f32 %v1055, %v948
        %v1076 = vadd.f32 %v1056, %v950
        %1077 = vrot.lane.b32.xlu0 %v362, 72
        %v1078 = vpop.permute.xlu0 %1077
        %1079 = vrot.lane.b32.xlu0 %v366, 72
        %v1080 = vpop.permute.xlu0 %1079
        %1083 = vrot.lane.b32.xlu0 %v362, 8
        %v1084 = vpop.permute.xlu0 %1083
        %1085 = vrot.lane.b32.xlu0 %v366, 8
        %v1086 = vpop.permute.xlu0 %1085
        %v1089 = vsel %vm839, %v1078, %v1084
        %v1090 = vsel %vm839, %v1080, %v1086
        %v1091 = vmul.f32 %v948, %v1089
        %v1092 = vmul.f32 %v950, %v1090
        %v1093 = vadd.f32 %v1073, %v1091
        %v1094 = vadd.f32 %v1074, %v1092
        %v1095 = vrcp.pop %v1075
        %v1096 = vrcp.pop %v1076
        %v1097 = vmul.f32 %v1093, %v1095
        %v1098 = vmul.f32 %v1094, %v1096
        %v1099 = vpack.c.bf16 %v1098, %v1097
        %v1100 = vld [vmem:[%s4] sm:$0xf]
        %v1101 = vld [vmem:[%s4 + $0x4] sm:$0xf]
        %v1102 = vld [vmem:[%s4 + $0x8] sm:$0xf]
        %v1103 = vld [vmem:[%s4 + $0xc] sm:$0xf]
        %v1104 = vld [vmem:[%s4 + $0x10] sm:$0xf]
        %v1105 = vld [vmem:[%s4 + $0x14] sm:$0xf]
        %v1106 = vld [vmem:[%s4 + $0x18] sm:$0xf]
        %v1107 = vld [vmem:[%s4 + $0x1c] sm:$0xf]
        %v1108 = vld [vmem:[%s5] sm:$0x1]
        %v1110 = vlaneseq
        %v1111 = vshrl.u32 %v1110, 7
        %v1112 = vsub.s32 0, %v1111
        %v1113 = vrot.slane %v1108, %v1112
        %v1123 = vunpack.c.l.b16 %v1100
        %v1124 = vunpack.c.l.b16 %v1101
        %v1125 = vunpack.c.l.b16 %v1102
        %v1126 = vunpack.c.l.b16 %v1103
        %v1127 = vunpack.c.l.b16 %v1104
        %v1128 = vunpack.c.l.b16 %v1105
        %v1129 = vunpack.c.l.b16 %v1106
        %v1130 = vunpack.c.l.b16 %v1107
        %v1131 = vpack.c.b16 %v1124, %v1123
        %v1132 = vpack.c.b16 %v1126, %v1125
        %v1133 = vpack.c.b16 %v1128, %v1127
        %v1134 = vpack.c.b16 %v1130, %v1129
        %v1140 = vsel %vm321, %v1099, 0
        %1142 = vmatprep.subr.bf16.mxu0 0
        %1143 = vmatpush1.bf16.msra.mxu0 %v1131
        %1144 = vmatprep.subr.bf16.mxu0 0
        %1145 = vmatpush1.bf16.msra.mxu0 %v1132
        %1146 = vmatprep.subr.bf16.mxu0 0
        %1147 = vmatpush1.bf16.msra.mxu0 %v1133
        %1148 = vmatprep.subr.bf16.mxu0 0
        %1149 = vmatpush1.bf16.msra.mxu0 %v1134
        %1150 = vmatprep.subr.bf16.mxu0 0
        %1151 = vmatpush1.bf16.msra.mxu0 0
        %1152 = vmatprep.subr.bf16.mxu0 0
        %1153 = vmatpush1.bf16.msra.mxu0 0
        %1154 = vmatprep.subr.bf16.mxu0 0
        %1155 = vmatpush1.bf16.msra.mxu0 0
        %1156 = vmatprep.subr.bf16.mxu0 0
        %1157 = vmatpush1.bf16.msra.mxu0 0
        %1158 = vmatprep.subr.bf16.mxu0 0
        %1159 = vmatpush1.bf16.msra.mxu0 0
        %1160 = vmatprep.subr.bf16.mxu0 0
        %1161 = vmatpush1.bf16.msra.mxu0 0
        %1162 = vmatprep.subr.bf16.mxu0 0
        %1163 = vmatpush1.bf16.msra.mxu0 0
        %1164 = vmatprep.subr.bf16.mxu0 0
        %1165 = vmatpush1.bf16.msra.mxu0 0
        %1166 = vmatprep.subr.bf16.mxu0 0
        %1167 = vmatpush1.bf16.msra.mxu0 0
        %1168 = vmatprep.subr.bf16.mxu0 0
        %1169 = vmatpush1.bf16.msra.mxu0 0
        %1170 = vmatprep.subr.bf16.mxu0 0
        %1171 = vmatpush1.bf16.msra.mxu0 0
        %1172 = vmatprep.subr.bf16.mxu0 0
        %1173 = vmatpush1.bf16.msra.mxu0 0
        %1174 = vmatprep.mubr.bf16.mxu0 0
        %1175 = vmatmul.mubr.bf16.gmra.mrb[0].mxu0 %v1140
        %v1176 = vpop.f32.mrb[0].mxu0
        %v1177 = vadd.f32 %v1113, %v1176
        %v1178 = vpop.f32.mrb[0].mxu0
        %v1179 = vpop.f32.mrb[0].mxu0
        %v1180 = vadd.f32 %v1113, %v1179
        %v1181 = vpop.f32.mrb[0].mxu0
        %1182 = vdwg.mxu0
        %1183 = vst.msk [vmem:[%s245] sm:$0xff] %vm321, %v1177
        %1184 = vst.msk [vmem:[%s245 + $0x8] sm:$0xff] %vm321, %v1180
        %s1185 = sand.u32 %s159, 1
        %s1186 = scalar_lea.sflag [#allocation3], %s1185
        %s1187 = sand.u32 %s159, 1
        %s1188 = smul.addr %s1187, 16
        %s1189 = scalar_lea.vmem [#allocation2], %s1188
        // Predicated region
        $region45: #{flash_self_attention.1} parent=43 // pred_check
          %p1190 = pneg %p169
        $region46: #{flash_self_attention.1} parent=43 // pred_check_branch
          %1192 = sbr.rel (%p1190) target = $region48
        $region47: #{flash_self_attention.1} parent=43 // pred_region
          %s1193 = smul.u32 2, %s20
          %s1195 = ssub.s32 256, 256
          %1196 = vsyncadd %s1186, %s1195
          %s1197 = smul.addr %s1193, 128
          %s1198 = scalar_lea.hbm %s6, %s1197
          %s1199 = sshll.u32 %s1189, 4
          %s1200 = int_to_ptr.vmem [resolvable:$true] %s1199
          %1205 = dma.vmem_to_hbm [thread:$0]  %s1200, 256, %s1198, %s1186, 128, 128, 8
        $region48: #{flash_self_attention.1} parent=43 // pred_fallthru
          _
      $region44: #{flash_self_attention.1} parent=5 // pred_fallthru
        _
      %p1206 = scmp.le.s32.totalorder 2, %s15
      // Predicated region
      $region49: #{flash_self_attention.1} parent=5 // pred_check
        %p1207 = pneg %p1206
      $region50: #{flash_self_attention.1} parent=5 // pred_check_branch
        %1209 = sbr.rel (%p1207) target = $region52
      $region51: #{flash_self_attention.1} parent=5 // pred_region
        %s1210 = ssub.s32 %s15, 2
        // Predicated region
        $region53: #{flash_self_attention.1} parent=51 // pred_check
          %p1211 = pneg %p175
        $region54: #{flash_self_attention.1} parent=51 // pred_check_branch
          %1213 = sbr.rel (%p1211) target = $region56
        $region55: #{flash_self_attention.1} parent=51 // pred_region
          %s1214 = sand.u32 %s160, 1
          %s1215 = scalar_lea.sflag [#allocation3], %s1214
          %s1216 = sand.u32 %s160, 1
          %s1217 = smul.addr %s1216, 16
          %s1218 = scalar_lea.vmem [#allocation2], %s1217
          %1219 = dma.done %s1215, 256
        $region56: #{flash_self_attention.1} parent=51 // pred_fallthru
          _
      $region52: #{flash_self_attention.1} parent=5 // pred_fallthru
        _
    $region6: #{flash_self_attention.1} parent=1 // loop_footer
      %s19 = sadd.s32 1, %s15
    $region7: #{flash_self_attention.1} parent=1 // loop_footer_branch
      %14 = sbr.rel target = $region3
    $region8: #{flash_self_attention.1} parent=1 // loop_exit
      _
    %1220 = vsyncpa [#allocation3], 1
    %s1221 = scalar_lea.sflag [#allocation3], 1
    %1222 = vsyncpa %s1221, 1

</llo_original>
